<compile_context>
chip_gen: v5e
topology: v5e:2x2
jax: 0.10.0
libtpu: 0.0.40
codegen_flags: <defaults>
</compile_context>

<pallas_src>
import functools

import jax
import jax.numpy as jnp
from jax.experimental import pallas as pl
from jax.experimental.pallas import tpu as pltpu

_LANES = 512  # lane dimension: large multiple of 128 (lane-dense, contiguous DMA)


def _round_up(a, m):
    return -(-a // m) * m


def _raf_kernel(x_ref, i_ref, v_ref,
                i_out_ref, v_out_ref, spk_ref,
                *, beta, frequency, threshold, v_reset):
    # Compute in f32 regardless of I/O dtype (matches PyTorch fp32 semantics).
    x = x_ref[...].astype(jnp.float32)
    I = i_ref[...].astype(jnp.float32)
    V = v_ref[...].astype(jnp.float32)

    omb_f = (1.0 - beta) * frequency

    # RAF state update
    I_new = beta * I - omb_f * V + x
    V_new = omb_f * I + beta * V

    # Spike: Heaviside on (V_new - threshold), strict inequality (ATan.forward)
    spike = (V_new - threshold > 0.0)

    # Reset: neurons with V_new >= threshold get I = 0, V = V_reset
    fire = V_new >= threshold
    I_out = jnp.where(fire, 0.0, I_new)
    V_out = jnp.where(fire, v_reset, V_new)

    i_out_ref[...] = I_out.astype(i_out_ref.dtype)
    v_out_ref[...] = V_out.astype(v_out_ref.dtype)
    spk_ref[...] = spike.astype(spk_ref.dtype)


def raf_forward(x, I, V, *, beta, frequency, threshold=1.0, v_reset=None):
    """RAF forward. x, I, V are float arrays of identical shape (any rank).

    Returns (I_new, V_new, spike), each the same shape/dtype as x.
    """
    if v_reset is None:
        v_reset = -float(threshold) / 2.0

    orig_shape = x.shape
    dtype = x.dtype
    itemsize = jnp.dtype(dtype).itemsize
    n = 1
    for d in orig_shape:
        n *= int(d)

    # Sublane multiple is dtype-dependent: 8 for 4B, 16 for 2B, 32 for 1B.
    sub = {4: 8, 2: 16, 1: 32}.get(itemsize, 8)

    # --- Lane-dense slab layout: (rows, _LANES) ---------------------------
    rows = pl.cdiv(n, _LANES)
    pad = rows * _LANES - n  # 0 on the fast path (n % _LANES == 0)

    def to_slab(a):
        a = a.reshape(-1)                       # free (contiguous)
        if pad:
            a = jnp.pad(a, (0, pad))            # slow path only
        return a.reshape(rows, _LANES)          # free (contiguous)

    x2, I2, V2 = to_slab(x), to_slab(I), to_slab(V)
    slab_shape = (rows, _LANES)

    # --- Generation-aware tile sizing -------------------------------------
    try:
        vmem_cap = int(pltpu.get_tpu_info().vmem_capacity_bytes)
    except Exception:  # pragma: no cover - conservative fallback
        vmem_cap = 64 << 20
    # ~4 MiB/operand on 128-MiB-VMEM chips (v5e/v6e), ~2 MiB/operand on v7x.
    target_tile_bytes = (4 << 20) if vmem_cap >= (96 << 20) else (2 << 20)
    tm_max = max(sub, target_tile_bytes // (_LANES * itemsize))

    if rows <= sub:
        tm = rows                               # single block == full array dims
    else:
        tm = min(tm_max, _round_up(rows, sub))
        # Ensure >= 2 grid steps so both v7x TensorCores get work.
        if pl.cdiv(rows, tm) < 2:
            tm = _round_up(pl.cdiv(rows, 2), sub)
    grid = (pl.cdiv(rows, tm),)

    # VMEM budget: 6 operands x 2 buffers x tile, plus headroom; never exceed
    # physical capacity (keeps v7x within its 64 MiB per-core VMEM).
    tile_bytes = tm * _LANES * itemsize
    vmem_limit = min(max(32 << 20, (12 * tile_bytes * 4) // 3), vmem_cap)

    kernel = functools.partial(
        _raf_kernel,
        beta=float(beta),
        frequency=float(frequency),
        threshold=float(threshold),
        v_reset=float(v_reset),
    )

    out_sds = jax.ShapeDtypeStruct(slab_shape, dtype)
    spec = pl.BlockSpec((tm, _LANES), lambda i: (i, 0))

    total = rows * _LANES
    cost = pl.CostEstimate(
        flops=10 * total,
        transcendentals=0,
        bytes_accessed=6 * itemsize * total,
    )

    I_new, V_new, spike = pl.pallas_call(
        kernel,
        out_shape=(out_sds, out_sds, out_sds),
        grid=grid,
        in_specs=[spec, spec, spec],
        out_specs=(spec, spec, spec),
        # Reuse donated state buffers: I -> I_new, V -> V_new.
        input_output_aliases={1: 0, 2: 1},
        compiler_params=pltpu.CompilerParams(
            dimension_semantics=("parallel",),
            vmem_limit_bytes=int(vmem_limit)),
        cost_estimate=cost,
    )(x2, I2, V2)

    def from_slab(a):
        if pad:
            return a.reshape(-1)[:n].reshape(orig_shape)
        return a.reshape(orig_shape)            # free (contiguous)

    return from_slab(I_new), from_slab(V_new), from_slab(spike)


if __name__ == "__main__":
    # Deterministic RAF parameters (module __init__ args)
    frequency = 0.5
    beta = 0.9
    threshold = 1.0
    v_reset = -threshold / 2.0

    # Small example inputs, NCHW
    key = jax.random.PRNGKey(0)
    kx, ki, kv = jax.random.split(key, 3)
    shape = (2, 4, 16, 16)
    x = jax.random.normal(kx, shape, dtype=jnp.float32)
    I = jax.random.normal(ki, shape, dtype=jnp.float32)
    V = jax.random.normal(kv, shape, dtype=jnp.float32) * 1.5  # some neurons fire

    I_new, V_new, spike = raf_forward(
        x, I, V, beta=beta, frequency=frequency,
        threshold=threshold, v_reset=v_reset)
    jax.block_until_ready((I_new, V_new, spike))

    # Pure-JAX reference check (same math as the PyTorch forward)
    omb_f = (1.0 - beta) * frequency
    I_ref = beta * I - omb_f * V + x
    V_ref = omb_f * I + beta * V
    spk_ref = (V_ref - threshold > 0).astype(jnp.float32)
    fire = V_ref >= threshold
    I_ref = jnp.where(fire, 0.0, I_ref)
    V_ref = jnp.where(fire, v_reset, V_ref)

    assert jnp.allclose(I_new, I_ref, atol=1e-6)
    assert jnp.allclose(V_new, V_ref, atol=1e-6)
    assert jnp.array_equal(spike, spk_ref)

    # TODO(synk): ATan surrogate gradient (backward pass) and init_hidden /
    # _SpikeTensor state bookkeeping are host/autograd-side and not part of
    # this forward kernel.

    print("KERNEL_OK")
</pallas_src>

<mosaic_0001>
module attributes {stable_mosaic.version = 11 : i64} {
  func.func @_raf_kernel(%arg0: i32, %arg1: memref<4x512xf32, #tpu.memory_space<vmem>>, %arg2: memref<4x512xf32, #tpu.memory_space<vmem>>, %arg3: memref<4x512xf32, #tpu.memory_space<vmem>>, %arg4: memref<4x512xf32, #tpu.memory_space<vmem>>, %arg5: memref<4x512xf32, #tpu.memory_space<vmem>>, %arg6: memref<4x512xf32, #tpu.memory_space<vmem>>) attributes {dimension_semantics = [#tpu.dimension_semantics<parallel>], iteration_bounds = array<i64: 1>, scalar_prefetch = 0 : i64, scratch_operands = 0 : i64, tpu.core_type = #tpu.core_type<tc>, window_params = [{transform_indices = @transform_0, window_bounds = array<i64: 4, 512>}, {transform_indices = @transform_1, window_bounds = array<i64: 4, 512>}, {transform_indices = @transform_2, window_bounds = array<i64: 4, 512>}, {transform_indices = @transform_3, window_bounds = array<i64: 4, 512>}, {transform_indices = @transform_4, window_bounds = array<i64: 4, 512>}, {transform_indices = @transform_5, window_bounds = array<i64: 4, 512>}]} {
    %c0 = arith.constant 0 : index
    %c0_0 = arith.constant 0 : index
    %0 = vector.load %arg1[%c0, %c0_0] : memref<4x512xf32, #tpu.memory_space<vmem>>, vector<4x512xf32>
    %c0_1 = arith.constant 0 : index
    %c0_2 = arith.constant 0 : index
    %1 = vector.load %arg2[%c0_1, %c0_2] : memref<4x512xf32, #tpu.memory_space<vmem>>, vector<4x512xf32>
    %c0_3 = arith.constant 0 : index
    %c0_4 = arith.constant 0 : index
    %2 = vector.load %arg3[%c0_3, %c0_4] : memref<4x512xf32, #tpu.memory_space<vmem>>, vector<4x512xf32>
    %cst = arith.constant 0.899999976 : f32
    %3 = vector.broadcast %cst : f32 to vector<4x512xf32>
    %4 = arith.mulf %3, %1 : vector<4x512xf32>
    %cst_5 = arith.constant 5.000000e-02 : f32
    %5 = vector.broadcast %cst_5 : f32 to vector<4x512xf32>
    %6 = arith.mulf %5, %2 : vector<4x512xf32>
    %7 = arith.subf %4, %6 : vector<4x512xf32>
    %8 = arith.addf %7, %0 : vector<4x512xf32>
    %cst_6 = arith.constant 5.000000e-02 : f32
    %9 = vector.broadcast %cst_6 : f32 to vector<4x512xf32>
    %10 = arith.mulf %9, %1 : vector<4x512xf32>
    %cst_7 = arith.constant 0.899999976 : f32
    %11 = vector.broadcast %cst_7 : f32 to vector<4x512xf32>
    %12 = arith.mulf %11, %2 : vector<4x512xf32>
    %13 = arith.addf %10, %12 : vector<4x512xf32>
    %cst_8 = arith.constant 1.000000e+00 : f32
    %14 = vector.broadcast %cst_8 : f32 to vector<4x512xf32>
    %15 = arith.subf %13, %14 : vector<4x512xf32>
    %cst_9 = arith.constant 0.000000e+00 : f32
    %16 = vector.broadcast %cst_9 : f32 to vector<4x512xf32>
    %17 = arith.cmpf ogt, %15, %16 : vector<4x512xf32>
    %cst_10 = arith.constant 1.000000e+00 : f32
    %18 = vector.broadcast %cst_10 : f32 to vector<4x512xf32>
    %19 = arith.cmpf oge, %13, %18 : vector<4x512xf32>
    %cst_11 = arith.constant 0.000000e+00 : f32
    %20 = vector.broadcast %cst_11 : f32 to vector<4x512xf32>
    %21 = arith.select %19, %20, %8 : vector<4x512xi1>, vector<4x512xf32>
    %cst_12 = arith.constant -5.000000e-01 : f32
    %22 = vector.broadcast %cst_12 : f32 to vector<4x512xf32>
    %23 = arith.select %19, %22, %13 : vector<4x512xi1>, vector<4x512xf32>
    %c0_13 = arith.constant 0 : index
    %c0_14 = arith.constant 0 : index
    %24 = vector.load %arg4[%c0_13, %c0_14] : memref<4x512xf32, #tpu.memory_space<vmem>>, vector<4x512xf32>
    tpu.vector_store %arg4[%c0_13, %c0_14], %21 {strides = array<i32>} : memref<4x512xf32, #tpu.memory_space<vmem>>, vector<4x512xf32>,
    %c0_15 = arith.constant 0 : index
    %c0_16 = arith.constant 0 : index
    %25 = vector.load %arg5[%c0_15, %c0_16] : memref<4x512xf32, #tpu.memory_space<vmem>>, vector<4x512xf32>
    tpu.vector_store %arg5[%c0_15, %c0_16], %23 {strides = array<i32>} : memref<4x512xf32, #tpu.memory_space<vmem>>, vector<4x512xf32>,
    %26 = arith.extui %17 : vector<4x512xi1> to vector<4x512xi32>
    %27 = arith.sitofp %26 : vector<4x512xi32> to vector<4x512xf32>
    %c0_17 = arith.constant 0 : index
    %c0_18 = arith.constant 0 : index
    %28 = vector.load %arg6[%c0_17, %c0_18] : memref<4x512xf32, #tpu.memory_space<vmem>>, vector<4x512xf32>
    tpu.vector_store %arg6[%c0_17, %c0_18], %27 {strides = array<i32>} : memref<4x512xf32, #tpu.memory_space<vmem>>, vector<4x512xf32>,
    return
  }
  func.func @transform_0(%arg0: i32) -> (i32, i32) {
    %c0_i32 = arith.constant 0 : i32
    %c0_i32_0 = arith.constant 0 : i32
    return %arg0, %c0_i32 : i32, i32
  }
  func.func @transform_1(%arg0: i32) -> (i32, i32) {
    %c0_i32 = arith.constant 0 : i32
    %c0_i32_0 = arith.constant 0 : i32
    return %arg0, %c0_i32 : i32, i32
  }
  func.func @transform_2(%arg0: i32) -> (i32, i32) {
    %c0_i32 = arith.constant 0 : i32
    %c0_i32_0 = arith.constant 0 : i32
    return %arg0, %c0_i32 : i32, i32
  }
  func.func @transform_3(%arg0: i32) -> (i32, i32) {
    %c0_i32 = arith.constant 0 : i32
    %c0_i32_0 = arith.constant 0 : i32
    return %arg0, %c0_i32 : i32, i32
  }
  func.func @transform_4(%arg0: i32) -> (i32, i32) {
    %c0_i32 = arith.constant 0 : i32
    %c0_i32_0 = arith.constant 0 : i32
    return %arg0, %c0_i32 : i32, i32
  }
  func.func @transform_5(%arg0: i32) -> (i32, i32) {
    %c0_i32 = arith.constant 0 : i32
    %c0_i32_0 = arith.constant 0 : i32
    return %arg0, %c0_i32 : i32, i32
  }
}

</mosaic_0001>

<llo_original>
// kernel: tpu_custom_call.1
$region0: #{tpu_custom_call.1}
  #allocation0 [shape = 'u32[]', space=smem, size = 0x4, offset = 0x4, fixed_abs, tag = 'smem constant byte address 0x4 - core index']
  #allocation1 [shape = 'u32[72,128]{1,0:T(1,128)}', space=vmem, size = 0x9000, scoped, tag = 'internal scratch']
  %s0 = inlined_call_operand.vmem [shape: f32[4,512], index: 0, kind: input, shape index: {}]
  %s1 = inlined_call_operand.hbm [shape: f32[4,512], index: 1, kind: input, shape index: {}, may-alias: {1,3}]
  %s2 = inlined_call_operand.hbm [shape: f32[4,512], index: 2, kind: input, shape index: {}, may-alias: {2,4}]
  %s3 = inlined_call_operand.hbm [shape: f32[4,512], index: 3, kind: output, shape index: {0}, may-alias: {1,3}]
  %s4 = inlined_call_operand.hbm [shape: f32[4,512], index: 4, kind: output, shape index: {1}, may-alias: {2,4}]
  %s5 = inlined_call_operand.hbm [shape: f32[4,512], index: 5, kind: output, shape index: {2}]
  %6 = xla_tuple %s3, %s4, %s5
  %s7 = sld [smem:[#allocation0]]
  $region46: #{tpu_custom_call.1} parent=0
    _
  %s9 = ssub.s32 1, %s7
  %s10 = scalar_select 0, %s9, %s7
  $region1: #{tpu_custom_call.1} parent=0
    #allocation2 [shape = 'u8[8192]{0}', space=vmem, size = 0x2000, scoped, tag = 'input window, operand 1, single buffered']
    #allocation3 [shape = 's32[1]{0}', space=sflag, size = 0x4, scoped, tag = 'scoped memory for tpu_custom_call.1']
    #allocation4 [shape = 's32[1]{0}', space=sflag, size = 0x4, scoped, tag = 'scoped memory for tpu_custom_call.1']
    #allocation5 [shape = 'u8[8192]{0}', space=vmem, size = 0x2000, scoped, tag = 'input window, operand 2, single buffered']
    #allocation6 [shape = 's32[1]{0}', space=sflag, size = 0x4, scoped, tag = 'scoped memory for tpu_custom_call.1']
    #allocation7 [shape = 'u8[8192]{0}', space=vmem, size = 0x2000, scoped, tag = 'output window, operand 0, single buffered']
    #allocation8 [shape = 'u8[8192]{0}', space=vmem, size = 0x2000, scoped, tag = 'output window, operand 1, single buffered']
    #allocation9 [shape = 's32[1]{0}', space=sflag, size = 0x4, scoped, tag = 'scoped memory for tpu_custom_call.1']
    #allocation10 [shape = 'u8[8192]{0}', space=vmem, size = 0x2000, scoped, tag = 'output window, operand 2, single buffered']
    %11 = vsyncpa [#allocation3], 0
    %12 = vsyncpa [#allocation6], 0
    %13 = vsyncpa [#allocation4], 0
    %14 = vsyncpa [#allocation9], 0
    // Predicated region
    $region2: #{tpu_custom_call.1} parent=1 // pred_check
      _
    $region3: #{tpu_custom_call.1} parent=1 // pred_check_branch
      %16 = sbr.rel (0) target = $region5
    $region4: #{tpu_custom_call.1} parent=1 // pred_region
      _
    $region5: #{tpu_custom_call.1} parent=1 // pred_fallthru
      _
    // Predicated region
    $region6: #{tpu_custom_call.1} parent=1 // pred_check
      _
    $region7: #{tpu_custom_call.1} parent=1 // pred_check_branch
      %18 = sbr.rel (0) target = $region9
    $region8: #{tpu_custom_call.1} parent=1 // pred_region
      %20 = vsyncadd [#allocation3], 0
      %s22 = sshll.u32 %s1, 4
      %s23 = int_to_ptr.hbm [resolvable:$true] %s22
      %s24 = sshll.u32 [#allocation2], 4
      %s25 = int_to_ptr.vmem [resolvable:$true] %s24
      %27 = dma.hbm_to_vmem [thread:$0]  %s23, 256, %s25, [#allocation3]
    $region9: #{tpu_custom_call.1} parent=1 // pred_fallthru
      _
    // Predicated region
    $region10: #{tpu_custom_call.1} parent=1 // pred_check
      _
    $region11: #{tpu_custom_call.1} parent=1 // pred_check_branch
      %29 = sbr.rel (0) target = $region13
    $region12: #{tpu_custom_call.1} parent=1 // pred_region
      %31 = vsyncadd [#allocation6], 0
      %s33 = sshll.u32 %s2, 4
      %s34 = int_to_ptr.hbm [resolvable:$true] %s33
      %s35 = sshll.u32 [#allocation5], 4
      %s36 = int_to_ptr.vmem [resolvable:$true] %s35
      %38 = dma.hbm_to_vmem [thread:$0]  %s34, 256, %s36, [#allocation6]
    $region13: #{tpu_custom_call.1} parent=1 // pred_fallthru
      _
    // Predicated region
    $region14: #{tpu_custom_call.1} parent=1 // pred_check
      _
    $region15: #{tpu_custom_call.1} parent=1 // pred_check_branch
      %40 = sbr.rel (0) target = $region17
    $region16: #{tpu_custom_call.1} parent=1 // pred_region
      %42 = dma.done [#allocation3], 256
    $region17: #{tpu_custom_call.1} parent=1 // pred_fallthru
      _
    // Predicated region
    $region18: #{tpu_custom_call.1} parent=1 // pred_check
      _
    $region19: #{tpu_custom_call.1} parent=1 // pred_check_branch
      %44 = sbr.rel (0) target = $region21
    $region20: #{tpu_custom_call.1} parent=1 // pred_region
      %46 = dma.done [#allocation6], 256
    $region21: #{tpu_custom_call.1} parent=1 // pred_fallthru
      _
    %v47 = vld [vmem:[%s0] sm:$0xff]
    %v48 = vld [vmem:[%s0 + $0x8] sm:$0xff]
    %v49 = vld [vmem:[#allocation2] sm:$0xff]
    %v50 = vld [vmem:[#allocation2 + $0x8] sm:$0xff]
    %v51 = vld [vmem:[#allocation5] sm:$0xff]
    %v52 = vld [vmem:[#allocation5 + $0x8] sm:$0xff]
    %v53 = vmul.f32 %v49, 0.9
    %v54 = vmul.f32 %v50, 0.9
    %v55 = vmul.f32 %v51, 0.05
    %v56 = vmul.f32 %v52, 0.05
    %v57 = vsub.f32 %v53, %v55
    %v58 = vsub.f32 %v54, %v56
    %v59 = vadd.f32 %v57, %v47
    %v60 = vadd.f32 %v58, %v48
    %v61 = vmul.f32 %v49, 0.05
    %v62 = vmul.f32 %v50, 0.05
    %v63 = vmul.f32 %v51, 0.9
    %v64 = vmul.f32 %v52, 0.9
    %v65 = vadd.f32 %v61, %v63
    %v66 = vadd.f32 %v62, %v64
    %v67 = vsub.f32 %v65, 1.0
    %v68 = vsub.f32 %v66, 1.0
    %vm69 = vcmp.gt.f32.partialorder %v67, 0.0
    %vm70 = vcmp.gt.f32.partialorder %v68, 0.0
    %vm71 = vcmp.ge.f32.partialorder %v65, 1.0
    %vm72 = vcmp.ge.f32.partialorder %v66, 1.0
    %v73 = vsel %vm71, 0.0, %v59
    %v74 = vsel %vm72, 0.0, %v60
    %v75 = vsel %vm71, -0.5, %v65
    %v76 = vsel %vm72, -0.5, %v66
    %77 = vst [vmem:[#allocation7] sm:$0xff] %v73
    %78 = vst [vmem:[#allocation7 + $0x8] sm:$0xff] %v74
    %79 = vst [vmem:[#allocation8] sm:$0xff] %v75
    %80 = vst [vmem:[#allocation8 + $0x8] sm:$0xff] %v76
    %v81 = vsel %vm69, 1, 0
    %v82 = vsel %vm70, 1, 0
    %v83 = vcvt.s32.f32 %v81
    %v84 = vcvt.s32.f32 %v82
    %85 = vst [vmem:[#allocation10] sm:$0xff] %v83
    %86 = vst [vmem:[#allocation10 + $0x8] sm:$0xff] %v84
    // Predicated region
    $region22: #{tpu_custom_call.1} parent=1 // pred_check
      _
    $region23: #{tpu_custom_call.1} parent=1 // pred_check_branch
      %88 = sbr.rel (0) target = $region25
    $region24: #{tpu_custom_call.1} parent=1 // pred_region
      %90 = vsyncadd [#allocation4], 0
      %s92 = sshll.u32 [#allocation7], 4
      %s93 = int_to_ptr.vmem [resolvable:$true] %s92
      %s94 = sshll.u32 %s3, 4
      %s95 = int_to_ptr.hbm [resolvable:$true] %s94
      %97 = dma.vmem_to_hbm [thread:$0]  %s93, 256, %s95, [#allocation4]
    $region25: #{tpu_custom_call.1} parent=1 // pred_fallthru
      _
    // Predicated region
    $region26: #{tpu_custom_call.1} parent=1 // pred_check
      _
    $region27: #{tpu_custom_call.1} parent=1 // pred_check_branch
      %99 = sbr.rel (0) target = $region29
    $region28: #{tpu_custom_call.1} parent=1 // pred_region
      %101 = vsyncadd [#allocation9], 0
      %s103 = sshll.u32 [#allocation8], 4
      %s104 = int_to_ptr.vmem [resolvable:$true] %s103
      %s105 = sshll.u32 %s4, 4
      %s106 = int_to_ptr.hbm [resolvable:$true] %s105
      %108 = dma.vmem_to_hbm [thread:$0]  %s104, 256, %s106, [#allocation9]
    $region29: #{tpu_custom_call.1} parent=1 // pred_fallthru
      _
    // Predicated region
    $region30: #{tpu_custom_call.1} parent=1 // pred_check
      _
    $region31: #{tpu_custom_call.1} parent=1 // pred_check_branch
      %110 = sbr.rel (0) target = $region33
    $region32: #{tpu_custom_call.1} parent=1 // pred_region
      %112 = vsyncadd [#allocation9], 0
      %s114 = sshll.u32 [#allocation10], 4
      %s115 = int_to_ptr.vmem [resolvable:$true] %s114
      %s116 = sshll.u32 %s5, 4
      %s117 = int_to_ptr.hbm [resolvable:$true] %s116
      %119 = dma.vmem_to_hbm [thread:$0]  %s115, 256, %s117, [#allocation9]
    $region33: #{tpu_custom_call.1} parent=1 // pred_fallthru
      _
    // Predicated region
    $region34: #{tpu_custom_call.1} parent=1 // pred_check
      _
    $region35: #{tpu_custom_call.1} parent=1 // pred_check_branch
      %121 = sbr.rel (0) target = $region37
    $region36: #{tpu_custom_call.1} parent=1 // pred_region
      %123 = dma.done [#allocation4], 256
    $region37: #{tpu_custom_call.1} parent=1 // pred_fallthru
      _
    // Predicated region
    $region38: #{tpu_custom_call.1} parent=1 // pred_check
      _
    $region39: #{tpu_custom_call.1} parent=1 // pred_check_branch
      %125 = sbr.rel (0) target = $region41
    $region40: #{tpu_custom_call.1} parent=1 // pred_region
      %127 = dma.done [#allocation9], 256
    $region41: #{tpu_custom_call.1} parent=1 // pred_fallthru
      _
    // Predicated region
    $region42: #{tpu_custom_call.1} parent=1 // pred_check
      _
    $region43: #{tpu_custom_call.1} parent=1 // pred_check_branch
      %129 = sbr.rel (0) target = $region45
    $region44: #{tpu_custom_call.1} parent=1 // pred_region
      %131 = dma.done [#allocation9], 256
    $region45: #{tpu_custom_call.1} parent=1 // pred_fallthru
      _
    %132 = vsyncpa [#allocation3], 1
    %133 = vsyncpa [#allocation6], 1
    %134 = vsyncpa [#allocation4], 1
    %135 = vsyncpa [#allocation9], 1

</llo_original>
